<compile_context>
chip_gen: v6e
topology: v6e:2x2x1
jax: 0.10.0
libtpu: 0.0.40
codegen_flags: <defaults>
</compile_context>

<pallas_src>
import functools
import math

import jax
import jax.numpy as jnp
from jax import lax
from jax.experimental import pallas as pl
from jax.experimental.pallas import tpu as pltpu


# ---------------------------------------------------------------------------
# Kernels
# ---------------------------------------------------------------------------

def _onehot_gather_kernel(tok_ref, emb_ref, out_ref, *, pack: int):
    """Tiny-vocab exact gather: onehot(tokens, V) @ table on the MXU.

    tok_ref: VMEM (rows, pack) int32 -- `pack` consecutive token ids per row
    emb_ref: VMEM (V, D)             -- full table, resident once
    out_ref: VMEM (rows, pack * D)   -- lane-dense packed output block
    """
    emb = emb_ref[...]
    tok = tok_ref[...]
    rows = tok.shape[0]
    V, D = emb.shape
    lane_iota = lax.broadcasted_iota(jnp.int32, (rows, V), 1)
    for j in range(pack):            # static, small (pack = 128 // D)
        onehot = (lane_iota == tok[:, j:j + 1]).astype(emb.dtype)
        piece = jnp.dot(onehot, emb, preferred_element_type=jnp.float32)
        # Write each D-wide piece straight into its lane segment (no concat,
        # no extra relayout); the HBM writeback is still a full 128-lane block.
        out_ref[:, j * D:(j + 1) * D] = piece.astype(out_ref.dtype)


def _take_gather_kernel(tok_ref, emb_ref, out_ref, *, pack: int):
    """Mid-vocab path: true row gather from a VMEM-resident table (O(1)/token)."""
    emb = emb_ref[...]
    tok = tok_ref[...]
    D = emb.shape[1]
    for j in range(pack):            # static, small
        piece = jnp.take(emb, tok[:, j], axis=0, mode="clip")    # (rows, D)
        out_ref[:, j * D:(j + 1) * D] = piece.astype(out_ref.dtype)


def _dma_gather_kernel(tok_ref, emb_hbm, out_ref, sem, *, window: int):
    """Big-vocab fallback: table stays in HBM; per-row DMA gather, pipelined
    with a `window`-deep in-flight DMA window.

    tok_ref: SMEM (n_pad,) int32  -- scalar-prefetched flat token ids
    emb_hbm: ANY/HBM (V, D)       -- embedding table left in place
    out_ref: VMEM (tb, D)         -- output block (rows land directly here)
    sem    : DMA semaphores (window,)
    """
    tb = out_ref.shape[0]
    base = pl.program_id(0) * tb

    def start(t):
        tid = tok_ref[base + t]
        pltpu.make_async_copy(emb_hbm.at[pl.ds(tid, 1)],
                              out_ref.at[pl.ds(t, 1)],
                              sem.at[t % window]).start()

    def wait_for(t):
        # Source index is irrelevant for wait(); only shape + semaphore matter.
        pltpu.make_async_copy(emb_hbm.at[pl.ds(0, 1)],
                              out_ref.at[pl.ds(t, 1)],
                              sem.at[t % window]).wait()

    for t in range(min(window, tb)):      # static prime of the DMA window
        start(t)

    def body(t, carry):
        wait_for(t)

        @pl.when(t + window < tb)
        def _():
            start(t + window)

        return carry

    lax.fori_loop(0, tb, body, 0)


# ---------------------------------------------------------------------------
# Wrapper
# ---------------------------------------------------------------------------

def _vmem_capacity_bytes() -> int:
    """Per-TensorCore VMEM capacity (128 MiB v5e/v6e, 64 MiB v7x)."""
    try:
        return int(pltpu.get_tpu_info().vmem_capacity_bytes)
    except Exception:
        return 64 * 1024 * 1024   # conservative (v7x-sized) fallback


def static_embedding_forward(tokens, emb_weight, *, token_block: int = 2048,
                             out_dtype=None, onehot_max_vocab: int = 512,
                             force_path=None):
    """Pallas equivalent of StaticEmbeddingLayer.forward(tokens) == table[tokens].

    tokens: integer ids, any shape.  emb_weight: (V, D).
    Returns tokens.shape + (D,) in `out_dtype` (defaults to the table dtype; pass
    jnp.bfloat16 for a bf16 consumer -- halves the HBM writeback this kernel is
    bound on).  Out-of-range ids are clamped (nn.Embedding would raise).
    """
    V, D = emb_weight.shape
    out_dtype = jnp.dtype(emb_weight.dtype if out_dtype is None else out_dtype)

    # bf16 output => keep the table bf16 too: exact for a gather (one nonzero per
    # output element), halves table VMEM footprint, MXU-native on v6e/v7x.
    if out_dtype == jnp.dtype(jnp.bfloat16) and emb_weight.dtype == jnp.float32:
        emb_weight = emb_weight.astype(jnp.bfloat16)

    lead_shape = tokens.shape
    N = math.prod(lead_shape) if lead_shape else 1

    # Lane-dense packing: `pack` consecutive tokens per 128-lane output row.
    pack = 128 // D if (D < 128 and 128 % D == 0) else 1
    quantum = pack * 8                      # (8, 128)-tiling quantum, in tokens

    # Tokens per grid step: big blocks amortize per-step pipeline overhead, but
    # keep >= 2 grid steps when there's enough work (v7x has 2 TensorCores).
    tb = max(quantum, (token_block // quantum) * quantum)
    tb = min(tb, pl.cdiv(N, quantum) * quantum)            # don't over-pad tiny N
    if N > 2 * quantum:
        tb = min(tb, max(quantum, (N // (2 * quantum)) * quantum))
    n_pad = pl.cdiv(N, tb) * tb
    n_blocks = n_pad // tb
    rows_pb = tb // pack

    flat = jnp.clip(tokens.reshape(N).astype(jnp.int32), 0, V - 1)
    if n_pad != N:
        flat = jnp.pad(flat, (0, n_pad - N))   # pad ids = 0; rows sliced off below

    # ---- path selection & VMEM budgeting (generation-aware) -----------------
    vmem_cap = _vmem_capacity_bytes()
    out_isz = out_dtype.itemsize
    table_bytes = V * D * jnp.dtype(emb_weight.dtype).itemsize
    blk_bytes = rows_pb * pack * 4 + rows_pb * pack * D * out_isz    # ids + out blocks
    interm_lanes = max(V, 128) if V <= onehot_max_vocab else max(D, 128)
    interm_bytes = rows_pb * interm_lanes * 4 * 2
    need = table_bytes + 2 * blk_bytes + interm_bytes + (4 << 20)    # + headroom
    table_fits = need <= (vmem_cap * 3) // 4    # ~48 MiB budget on v7x, ~96 MiB v5e/v6e

    if force_path is not None:
        path = force_path
    elif not table_fits:
        path = "hbm"
    elif V <= onehot_max_vocab:
        path = "onehot"
    else:
        path = "take"
    if path not in ("onehot", "take", "hbm"):
        raise ValueError(f"unknown path {path!r}")

    if path in ("onehot", "take"):
        tok2d = flat.reshape(n_pad // pack, pack)
        kern = _onehot_gather_kernel if path == "onehot" else _take_gather_kernel
        vmem_limit = int(min(max(need, 32 << 20), vmem_cap))
        out_packed = pl.pallas_call(
            functools.partial(kern, pack=pack),
            out_shape=jax.ShapeDtypeStruct((n_pad // pack, pack * D), out_dtype),
            grid=(n_blocks,),
            in_specs=[
                pl.BlockSpec((rows_pb, pack), lambda i: (i, 0)),
                # Whole table resident in VMEM once (no per-step DMA, no double
                # buffering).  Tables that don't fit take the "hbm" path below.
                pl.BlockSpec(memory_space=pltpu.MemorySpace.VMEM),
            ],
            out_specs=pl.BlockSpec((rows_pb, pack * D), lambda i: (i, 0)),
            compiler_params=pltpu.CompilerParams(
                dimension_semantics=("parallel",),    # blocks -> both TCs on v7x
                vmem_limit_bytes=vmem_limit,
            ),
        )(tok2d, emb_weight)
        out_flat = out_packed.reshape(n_pad, D)
    else:
        # Table stays in HBM; each row is fetched with a pipelined per-row DMA.
        # The DMA src dtype must match the output block dtype.
        # TODO(synk): at very large N, block the id array through SMEM instead of
        # scalar-prefetching it whole (1-D SMEM pads to next_pow2(4N) bytes).
        emb_dma = (emb_weight if emb_weight.dtype == out_dtype
                   else emb_weight.astype(out_dtype))
        window = min(8, tb)
        out_flat = pl.pallas_call(
            functools.partial(_dma_gather_kernel, window=window),
            out_shape=jax.ShapeDtypeStruct((n_pad, D), out_dtype),
            grid_spec=pltpu.PrefetchScalarGridSpec(
                num_scalar_prefetch=1,
                grid=(n_blocks,),
                in_specs=[pl.BlockSpec(memory_space=pl.ANY)],
                out_specs=pl.BlockSpec((tb, D), lambda i, ids: (i, 0)),
                scratch_shapes=[pltpu.SemaphoreType.DMA((window,))],
            ),
            compiler_params=pltpu.CompilerParams(
                dimension_semantics=("parallel",),
            ),
        )(flat, emb_dma)

    return out_flat[:N].reshape(*lead_shape, D)


# ---------------------------------------------------------------------------
# Demo / self-check
# ---------------------------------------------------------------------------

if __name__ == "__main__":
    # Small synthetic config: vocab=32 symbols, dim=32, tokens (B=2, S=8).
    VOCAB, DIM = 32, 32
    B, S = 2, 8

    key = jax.random.PRNGKey(0)
    k_emb, k_tok = jax.random.split(key)

    # Deterministic "nn.Embedding" weight (config.method='random' path).
    # TODO(synk): 'pretrained' init reads a word2vec text file; no file I/O here.
    emb_weight = jax.random.normal(k_emb, (VOCAB, DIM), dtype=jnp.float32)
    tokens = jax.random.randint(k_tok, (B, S), 0, VOCAB, dtype=jnp.int32)

    ref = emb_weight[tokens]                     # plain-JAX nn.Embedding lookup

    # Default path at this size: tiny-vocab one-hot MXU gather, table in VMEM.
    out = jax.block_until_ready(static_embedding_forward(tokens, emb_weight))
    assert out.shape == (B, S, DIM)
    assert jnp.allclose(out, ref), "VMEM-table gather mismatch"

    # Big-vocab fallback (forced here): HBM-resident table + per-row DMA gather.
    out_hbm = jax.block_until_ready(
        static_embedding_forward(tokens, emb_weight, force_path="hbm"))
    assert jnp.allclose(out_hbm, ref), "HBM DMA gather mismatch"

    print("KERNEL_OK")
</pallas_src>

<mosaic_0001>
module attributes {stable_mosaic.version = 11 : i64} {
  func.func @_onehot_gather_kernel(%arg0: i32, %arg1: memref<8x4xi32, #tpu.memory_space<vmem>>, %arg2: memref<32x32xf32, #tpu.memory_space<vmem>>, %arg3: memref<8x128xf32, #tpu.memory_space<vmem>>) attributes {dimension_semantics = [#tpu.dimension_semantics<parallel>], iteration_bounds = array<i64: 1>, scalar_prefetch = 0 : i64, scratch_operands = 0 : i64, tpu.core_type = #tpu.core_type<tc>, window_params = [{transform_indices = @transform_0, window_bounds = array<i64: 8, 4>}, {pipeline_mode = #tpu.pipeline_mode<synchronous>, transform_indices = @transform_1, window_bounds = array<i64: 32, 32>}, {transform_indices = @transform_2, window_bounds = array<i64: 8, 128>}]} {
    %c0 = arith.constant 0 : index
    %c0_0 = arith.constant 0 : index
    %0 = vector.load %arg2[%c0, %c0_0] : memref<32x32xf32, #tpu.memory_space<vmem>>, vector<32x32xf32>
    %c0_1 = arith.constant 0 : index
    %c0_2 = arith.constant 0 : index
    %1 = vector.load %arg1[%c0_1, %c0_2] : memref<8x4xi32, #tpu.memory_space<vmem>>, vector<8x4xi32>
    %2 = tpu.iota {dimensions = array<i32: 1>} : vector<8x32xi32>
    %3 = vector.extract_strided_slice %1 {offsets = [0, 0], sizes = [8, 1], strides = [1, 1]} : vector<8x4xi32> to vector<8x1xi32>
    %4 = vector.broadcast %3 : vector<8x1xi32> to vector<8x32xi32>
    %5 = arith.cmpi eq, %2, %4 : vector<8x32xi32>
    %6 = arith.extui %5 : vector<8x32xi1> to vector<8x32xi32>
    %7 = arith.sitofp %6 : vector<8x32xi32> to vector<8x32xf32>
    %cst = arith.constant dense<0.000000e+00> : vector<8x32xf32>
    %8 = tpu.matmul %7, %0, %cst {dimension_numbers = #tpu.dot_dimension_numbers<[1], [0], [0], [1], [0, 0, 1, 1], [], []>} : vector<8x32xf32>, vector<32x32xf32>, vector<8x32xf32> -> vector<8x32xf32>
    %c0_3 = arith.constant 0 : index
    %c0_4 = arith.constant 0 : index
    %9 = vector.load %arg3[%c0_3, %c0_4] : memref<8x128xf32, #tpu.memory_space<vmem>>, vector<8x32xf32>
    tpu.vector_store %arg3[%c0_3, %c0_4], %8 {strides = array<i32>} : memref<8x128xf32, #tpu.memory_space<vmem>>, vector<8x32xf32>,
    %10 = vector.extract_strided_slice %1 {offsets = [0, 1], sizes = [8, 1], strides = [1, 1]} : vector<8x4xi32> to vector<8x1xi32>
    %11 = vector.broadcast %10 : vector<8x1xi32> to vector<8x32xi32>
    %12 = arith.cmpi eq, %2, %11 : vector<8x32xi32>
    %13 = arith.extui %12 : vector<8x32xi1> to vector<8x32xi32>
    %14 = arith.sitofp %13 : vector<8x32xi32> to vector<8x32xf32>
    %cst_5 = arith.constant dense<0.000000e+00> : vector<8x32xf32>
    %15 = tpu.matmul %14, %0, %cst_5 {dimension_numbers = #tpu.dot_dimension_numbers<[1], [0], [0], [1], [0, 0, 1, 1], [], []>} : vector<8x32xf32>, vector<32x32xf32>, vector<8x32xf32> -> vector<8x32xf32>
    %c0_6 = arith.constant 0 : index
    %c32 = arith.constant 32 : index
    %16 = vector.load %arg3[%c0_6, %c32] : memref<8x128xf32, #tpu.memory_space<vmem>>, vector<8x32xf32>
    tpu.vector_store %arg3[%c0_6, %c32], %15 {strides = array<i32>} : memref<8x128xf32, #tpu.memory_space<vmem>>, vector<8x32xf32>,
    %17 = vector.extract_strided_slice %1 {offsets = [0, 2], sizes = [8, 1], strides = [1, 1]} : vector<8x4xi32> to vector<8x1xi32>
    %18 = vector.broadcast %17 : vector<8x1xi32> to vector<8x32xi32>
    %19 = arith.cmpi eq, %2, %18 : vector<8x32xi32>
    %20 = arith.extui %19 : vector<8x32xi1> to vector<8x32xi32>
    %21 = arith.sitofp %20 : vector<8x32xi32> to vector<8x32xf32>
    %cst_7 = arith.constant dense<0.000000e+00> : vector<8x32xf32>
    %22 = tpu.matmul %21, %0, %cst_7 {dimension_numbers = #tpu.dot_dimension_numbers<[1], [0], [0], [1], [0, 0, 1, 1], [], []>} : vector<8x32xf32>, vector<32x32xf32>, vector<8x32xf32> -> vector<8x32xf32>
    %c0_8 = arith.constant 0 : index
    %c64 = arith.constant 64 : index
    %23 = vector.load %arg3[%c0_8, %c64] : memref<8x128xf32, #tpu.memory_space<vmem>>, vector<8x32xf32>
    tpu.vector_store %arg3[%c0_8, %c64], %22 {strides = array<i32>} : memref<8x128xf32, #tpu.memory_space<vmem>>, vector<8x32xf32>,
    %24 = vector.extract_strided_slice %1 {offsets = [0, 3], sizes = [8, 1], strides = [1, 1]} : vector<8x4xi32> to vector<8x1xi32>
    %25 = vector.broadcast %24 : vector<8x1xi32> to vector<8x32xi32>
    %26 = arith.cmpi eq, %2, %25 : vector<8x32xi32>
    %27 = arith.extui %26 : vector<8x32xi1> to vector<8x32xi32>
    %28 = arith.sitofp %27 : vector<8x32xi32> to vector<8x32xf32>
    %cst_9 = arith.constant dense<0.000000e+00> : vector<8x32xf32>
    %29 = tpu.matmul %28, %0, %cst_9 {dimension_numbers = #tpu.dot_dimension_numbers<[1], [0], [0], [1], [0, 0, 1, 1], [], []>} : vector<8x32xf32>, vector<32x32xf32>, vector<8x32xf32> -> vector<8x32xf32>
    %c0_10 = arith.constant 0 : index
    %c96 = arith.constant 96 : index
    %30 = vector.load %arg3[%c0_10, %c96] : memref<8x128xf32, #tpu.memory_space<vmem>>, vector<8x32xf32>
    tpu.vector_store %arg3[%c0_10, %c96], %29 {strides = array<i32>} : memref<8x128xf32, #tpu.memory_space<vmem>>, vector<8x32xf32>,
    return
  }
  func.func @transform_0(%arg0: i32) -> (i32, i32) {
    %c0_i32 = arith.constant 0 : i32
    %c0_i32_0 = arith.constant 0 : i32
    return %arg0, %c0_i32 : i32, i32
  }
  func.func @transform_1(%arg0: i32) -> (i32, i32) {
    %c0_i32 = arith.constant 0 : i32
    %c0_i32_0 = arith.constant 0 : i32
    %c0_i32_1 = arith.constant 0 : i32
    return %c0_i32, %c0_i32_0 : i32, i32
  }
  func.func @transform_2(%arg0: i32) -> (i32, i32) {
    %c0_i32 = arith.constant 0 : i32
    %c0_i32_0 = arith.constant 0 : i32
    return %arg0, %c0_i32 : i32, i32
  }
}

</mosaic_0001>

<llo_original>
// kernel: tpu_custom_call.1
$region0: #{tpu_custom_call.1}
  #allocation0 [shape = 'u32[]', space=smem, size = 0x4, offset = 0x4, fixed_abs, tag = 'smem constant byte address 0x4 - core index']
  #allocation1 [shape = 'u32[144,128]{1,0:T(1,128)}', space=vmem, size = 0x12000, scoped, tag = 'internal scratch']
  %s0 = inlined_call_operand.vmem [shape: s32[8,4], index: 0, kind: input, shape index: {}]
  %s1 = inlined_call_operand.hbm [shape: f32[32,32], index: 1, kind: input, shape index: {}]
  %s2 = inlined_call_operand.hbm [shape: f32[8,128], index: 2, kind: output, shape index: {}]
  %s3 = sld [smem:[#allocation0]]
  $region22: #{tpu_custom_call.1} parent=0
    _
  %s5 = ssub.s32 1, %s3
  %s6 = scalar_select 0, %s5, %s3
  $region1: #{tpu_custom_call.1} parent=0
    #allocation2 [shape = 'u8[16384]{0}', space=vmem, size = 0x4000, scoped, tag = 'input window, operand 1, single buffered']
    #allocation3 [shape = 's32[1]{0}', space=sflag, size = 0x4, scoped, tag = 'scoped memory for tpu_custom_call.1']
    #allocation4 [shape = 's32[1]{0}', space=sflag, size = 0x4, scoped, tag = 'scoped memory for tpu_custom_call.1']
    #allocation5 [shape = 'u8[4096]{0}', space=vmem, size = 0x1000, scoped, tag = 'output window, operand 0, single buffered']
    %7 = vsyncpa [#allocation3], 0
    %8 = vsyncpa [#allocation4], 0
    // Predicated region
    $region2: #{tpu_custom_call.1} parent=1 // pred_check
      _
    $region3: #{tpu_custom_call.1} parent=1 // pred_check_branch
      %10 = sbr.rel (0) target = $region5
    $region4: #{tpu_custom_call.1} parent=1 // pred_region
      _
    $region5: #{tpu_custom_call.1} parent=1 // pred_fallthru
      _
    // Predicated region
    $region6: #{tpu_custom_call.1} parent=1 // pred_check
      _
    $region7: #{tpu_custom_call.1} parent=1 // pred_check_branch
      %12 = sbr.rel (0) target = $region9
    $region8: #{tpu_custom_call.1} parent=1 // pred_region
      %s14 = ssub.s32 512, 512
      %15 = vsyncadd [#allocation3], %s14
      %s16 = sshll.u32 [#allocation2], 4
      %s17 = int_to_ptr.vmem [resolvable:$true] %s16
      %22 = dma.hbm_to_vmem [thread:$0]  %s1, 512, %s17, [#allocation3], 128, 128, 8
    $region9: #{tpu_custom_call.1} parent=1 // pred_fallthru
      _
    // Predicated region
    $region10: #{tpu_custom_call.1} parent=1 // pred_check
      _
    $region11: #{tpu_custom_call.1} parent=1 // pred_check_branch
      %24 = sbr.rel (0) target = $region13
    $region12: #{tpu_custom_call.1} parent=1 // pred_region
      %25 = dma.done [#allocation3], 512
    $region13: #{tpu_custom_call.1} parent=1 // pred_fallthru
      _
    %v26 = vld [vmem:[#allocation2] sm:$0xff]
    %v27 = vld [vmem:[#allocation2 + $0x8] sm:$0xff]
    %v28 = vld [vmem:[#allocation2 + $0x10] sm:$0xff]
    %v29 = vld [vmem:[#allocation2 + $0x18] sm:$0xff]
    %v30 = vld [vmem:[%s0] sm:$0xff]
    %v31 = vlaneseq
    %v32 = vand.u32 %v31, 127
    %33 = vset.pattern.permute.xlu0 0
    %34 = vperm.xlu0 %33, %v30
    %v35 = vpop.permute.xlu0 %34
    %vm36 = vcmp.eq.s32.totalorder %v32, %v35
    %v37 = vsel %vm36, 1, 0
    %v38 = vcvt.s32.f32 %v37
    %vm39 = vcmask 261120
    %v41 = vsel %vm39, %v38, 0
    %43 = vmatprep.subr.mxu0 0.0
    %44 = vmatpush1.msra.mxu0 0.0
    %45 = vmatprep.subr.mxu0 0.0
    %46 = vmatpush1.msra.mxu0 0.0
    %47 = vmatprep.subr.mxu0 0.0
    %48 = vmatpush1.msra.mxu0 0.0
    %49 = vmatprep.subr.mxu0 0.0
    %50 = vmatpush1.msra.mxu0 0.0
    %51 = vmatprep.subr.mxu0 0.0
    %52 = vmatpush1.msra.mxu0 0.0
    %53 = vmatprep.subr.mxu0 0.0
    %54 = vmatpush1.msra.mxu0 0.0
    %55 = vmatprep.subr.mxu0 0.0
    %56 = vmatpush1.msra.mxu0 0.0
    %57 = vmatprep.subr.mxu0 0.0
    %58 = vmatpush1.msra.mxu0 0.0
    %59 = vmatprep.subr.mxu0 0.0
    %60 = vmatpush1.msra.mxu0 0.0
    %61 = vmatprep.subr.mxu0 0.0
    %62 = vmatpush1.msra.mxu0 0.0
    %63 = vmatprep.subr.mxu0 0.0
    %64 = vmatpush1.msra.mxu0 0.0
    %65 = vmatprep.subr.mxu0 0.0
    %66 = vmatpush1.msra.mxu0 0.0
    %67 = vmatprep.subr.mxu0 0.0
    %68 = vmatpush1.msra.mxu0 %v29
    %69 = vmatprep.subr.mxu0 0.0
    %70 = vmatpush1.msra.mxu0 %v28
    %71 = vmatprep.subr.mxu0 0.0
    %72 = vmatpush1.msra.mxu0 %v27
    %73 = vmatprep.subr.mxu0 0.0
    %74 = vmatpush1.msra.mxu0 %v26
    %75 = vmatprep.subr.mxu0 0.0
    %76 = vmatpush2.msra.mxu0 0.0
    %77 = vmatprep.subr.mxu0 0.0
    %78 = vmatpush2.msra.mxu0 0.0
    %79 = vmatprep.subr.mxu0 0.0
    %80 = vmatpush2.msra.mxu0 0.0
    %81 = vmatprep.subr.mxu0 0.0
    %82 = vmatpush2.msra.mxu0 0.0
    %83 = vmatprep.subr.mxu0 0.0
    %84 = vmatpush2.msra.mxu0 0.0
    %85 = vmatprep.subr.mxu0 0.0
    %86 = vmatpush2.msra.mxu0 0.0
    %87 = vmatprep.subr.mxu0 0.0
    %88 = vmatpush2.msra.mxu0 0.0
    %89 = vmatprep.subr.mxu0 0.0
    %90 = vmatpush2.msra.mxu0 0.0
    %91 = vmatprep.subr.mxu0 0.0
    %92 = vmatpush2.msra.mxu0 0.0
    %93 = vmatprep.subr.mxu0 0.0
    %94 = vmatpush2.msra.mxu0 0.0
    %95 = vmatprep.subr.mxu0 0.0
    %96 = vmatpush2.msra.mxu0 0.0
    %97 = vmatprep.subr.mxu0 0.0
    %98 = vmatpush2.msra.mxu0 0.0
    %99 = vmatprep.subr.mxu0 0.0
    %100 = vmatpush2.msra.mxu0 0.0
    %101 = vmatprep.subr.mxu0 0.0
    %102 = vmatpush2.msra.mxu0 0.0
    %103 = vmatprep.subr.mxu0 0.0
    %104 = vmatpush2.msra.mxu0 0.0
    %105 = vmatprep.subr.mxu0 0.0
    %106 = vmatpush2.msra.mxu0 0.0
    %107 = vmatprep.mubr.f32.mxu0 0.0
    %108 = vmatmul.mubr.f32.gmra.mxu0 %v41
    %v109 = vpop.f32.mrf.mxu0
    %v110 = vadd.f32 0.0, %v109
    %v111 = vpop.f32.mrf.mxu0
    %112 = vdwg.mxu0
    %113 = vst.msk [vmem:[#allocation5] sm:$0xff] %vm39, %v110
    %114 = vset.pattern.permute.xlu0 1
    %115 = vperm.xlu0 %114, %v30
    %v116 = vpop.permute.xlu0 %115
    %vm117 = vcmp.eq.s32.totalorder %v32, %v116
    %v118 = vsel %vm117, 1, 0
    %v119 = vcvt.s32.f32 %v118
    %v121 = vsel %vm39, %v119, 0
    %123 = vmatprep.subr.mxu0 0.0
    %124 = vmatpush1.msra.mxu0 0.0
    %125 = vmatprep.subr.mxu0 0.0
    %126 = vmatpush1.msra.mxu0 0.0
    %127 = vmatprep.subr.mxu0 0.0
    %128 = vmatpush1.msra.mxu0 0.0
    %129 = vmatprep.subr.mxu0 0.0
    %130 = vmatpush1.msra.mxu0 0.0
    %131 = vmatprep.subr.mxu0 0.0
    %132 = vmatpush1.msra.mxu0 0.0
    %133 = vmatprep.subr.mxu0 0.0
    %134 = vmatpush1.msra.mxu0 0.0
    %135 = vmatprep.subr.mxu0 0.0
    %136 = vmatpush1.msra.mxu0 0.0
    %137 = vmatprep.subr.mxu0 0.0
    %138 = vmatpush1.msra.mxu0 0.0
    %139 = vmatprep.subr.mxu0 0.0
    %140 = vmatpush1.msra.mxu0 0.0
    %141 = vmatprep.subr.mxu0 0.0
    %142 = vmatpush1.msra.mxu0 0.0
    %143 = vmatprep.subr.mxu0 0.0
    %144 = vmatpush1.msra.mxu0 0.0
    %145 = vmatprep.subr.mxu0 0.0
    %146 = vmatpush1.msra.mxu0 0.0
    %147 = vmatprep.subr.mxu0 0.0
    %148 = vmatpush1.msra.mxu0 %v29
    %149 = vmatprep.subr.mxu0 0.0
    %150 = vmatpush1.msra.mxu0 %v28
    %151 = vmatprep.subr.mxu0 0.0
    %152 = vmatpush1.msra.mxu0 %v27
    %153 = vmatprep.subr.mxu0 0.0
    %154 = vmatpush1.msra.mxu0 %v26
    %155 = vmatprep.subr.mxu0 0.0
    %156 = vmatpush2.msra.mxu0 0.0
    %157 = vmatprep.subr.mxu0 0.0
    %158 = vmatpush2.msra.mxu0 0.0
    %159 = vmatprep.subr.mxu0 0.0
    %160 = vmatpush2.msra.mxu0 0.0
    %161 = vmatprep.subr.mxu0 0.0
    %162 = vmatpush2.msra.mxu0 0.0
    %163 = vmatprep.subr.mxu0 0.0
    %164 = vmatpush2.msra.mxu0 0.0
    %165 = vmatprep.subr.mxu0 0.0
    %166 = vmatpush2.msra.mxu0 0.0
    %167 = vmatprep.subr.mxu0 0.0
    %168 = vmatpush2.msra.mxu0 0.0
    %169 = vmatprep.subr.mxu0 0.0
    %170 = vmatpush2.msra.mxu0 0.0
    %171 = vmatprep.subr.mxu0 0.0
    %172 = vmatpush2.msra.mxu0 0.0
    %173 = vmatprep.subr.mxu0 0.0
    %174 = vmatpush2.msra.mxu0 0.0
    %175 = vmatprep.subr.mxu0 0.0
    %176 = vmatpush2.msra.mxu0 0.0
    %177 = vmatprep.subr.mxu0 0.0
    %178 = vmatpush2.msra.mxu0 0.0
    %179 = vmatprep.subr.mxu0 0.0
    %180 = vmatpush2.msra.mxu0 0.0
    %181 = vmatprep.subr.mxu0 0.0
    %182 = vmatpush2.msra.mxu0 0.0
    %183 = vmatprep.subr.mxu0 0.0
    %184 = vmatpush2.msra.mxu0 0.0
    %185 = vmatprep.subr.mxu0 0.0
    %186 = vmatpush2.msra.mxu0 0.0
    %187 = vmatprep.mubr.f32.mxu0 0.0
    %188 = vmatmul.mubr.f32.gmra.mxu0 %v121
    %v189 = vpop.f32.mrf.mxu0
    %v190 = vadd.f32 0.0, %v189
    %v191 = vpop.f32.mrf.mxu0
    %192 = vdwg.mxu0
    %194 = vrot.lane.b32.xlu0 %v190, 32
    %v195 = vpop.permute.xlu0 %194
    %vm197 = vcmask 523520
    %198 = vst.msk [vmem:[#allocation5] sm:$0xff] %vm197, %v195
    %199 = vset.pattern.permute.xlu0 2
    %200 = vperm.xlu0 %199, %v30
    %v201 = vpop.permute.xlu0 %200
    %vm202 = vcmp.eq.s32.totalorder %v32, %v201
    %v203 = vsel %vm202, 1, 0
    %v204 = vcvt.s32.f32 %v203
    %v206 = vsel %vm39, %v204, 0
    %208 = vmatprep.subr.mxu0 0.0
    %209 = vmatpush1.msra.mxu0 0.0
    %210 = vmatprep.subr.mxu0 0.0
    %211 = vmatpush1.msra.mxu0 0.0
    %212 = vmatprep.subr.mxu0 0.0
    %213 = vmatpush1.msra.mxu0 0.0
    %214 = vmatprep.subr.mxu0 0.0
    %215 = vmatpush1.msra.mxu0 0.0
    %216 = vmatprep.subr.mxu0 0.0
    %217 = vmatpush1.msra.mxu0 0.0
    %218 = vmatprep.subr.mxu0 0.0
    %219 = vmatpush1.msra.mxu0 0.0
    %220 = vmatprep.subr.mxu0 0.0
    %221 = vmatpush1.msra.mxu0 0.0
    %222 = vmatprep.subr.mxu0 0.0
    %223 = vmatpush1.msra.mxu0 0.0
    %224 = vmatprep.subr.mxu0 0.0
    %225 = vmatpush1.msra.mxu0 0.0
    %226 = vmatprep.subr.mxu0 0.0
    %227 = vmatpush1.msra.mxu0 0.0
    %228 = vmatprep.subr.mxu0 0.0
    %229 = vmatpush1.msra.mxu0 0.0
    %230 = vmatprep.subr.mxu0 0.0
    %231 = vmatpush1.msra.mxu0 0.0
    %232 = vmatprep.subr.mxu0 0.0
    %233 = vmatpush1.msra.mxu0 %v29
    %234 = vmatprep.subr.mxu0 0.0
    %235 = vmatpush1.msra.mxu0 %v28
    %236 = vmatprep.subr.mxu0 0.0
    %237 = vmatpush1.msra.mxu0 %v27
    %238 = vmatprep.subr.mxu0 0.0
    %239 = vmatpush1.msra.mxu0 %v26
    %240 = vmatprep.subr.mxu0 0.0
    %241 = vmatpush2.msra.mxu0 0.0
    %242 = vmatprep.subr.mxu0 0.0
    %243 = vmatpush2.msra.mxu0 0.0
    %244 = vmatprep.subr.mxu0 0.0
    %245 = vmatpush2.msra.mxu0 0.0
    %246 = vmatprep.subr.mxu0 0.0
    %247 = vmatpush2.msra.mxu0 0.0
    %248 = vmatprep.subr.mxu0 0.0
    %249 = vmatpush2.msra.mxu0 0.0
    %250 = vmatprep.subr.mxu0 0.0
    %251 = vmatpush2.msra.mxu0 0.0
    %252 = vmatprep.subr.mxu0 0.0
    %253 = vmatpush2.msra.mxu0 0.0
    %254 = vmatprep.subr.mxu0 0.0
    %255 = vmatpush2.msra.mxu0 0.0
    %256 = vmatprep.subr.mxu0 0.0
    %257 = vmatpush2.msra.mxu0 0.0
    %258 = vmatprep.subr.mxu0 0.0
    %259 = vmatpush2.msra.mxu0 0.0
    %260 = vmatprep.subr.mxu0 0.0
    %261 = vmatpush2.msra.mxu0 0.0
    %262 = vmatprep.subr.mxu0 0.0
    %263 = vmatpush2.msra.mxu0 0.0
    %264 = vmatprep.subr.mxu0 0.0
    %265 = vmatpush2.msra.mxu0 0.0
    %266 = vmatprep.subr.mxu0 0.0
    %267 = vmatpush2.msra.mxu0 0.0
    %268 = vmatprep.subr.mxu0 0.0
    %269 = vmatpush2.msra.mxu0 0.0
    %270 = vmatprep.subr.mxu0 0.0
    %271 = vmatpush2.msra.mxu0 0.0
    %272 = vmatprep.mubr.f32.mxu0 0.0
    %273 = vmatmul.mubr.f32.gmra.mxu0 %v206
    %v274 = vpop.f32.mrf.mxu0
    %v275 = vadd.f32 0.0, %v274
    %v276 = vpop.f32.mrf.mxu0
    %277 = vdwg.mxu0
    %279 = vrot.lane.b32.xlu0 %v275, 64
    %v280 = vpop.permute.xlu0 %279
    %vm282 = vcmask 785920
    %283 = vst.msk [vmem:[#allocation5] sm:$0xff] %vm282, %v280
    %284 = vset.pattern.permute.xlu0 3
    %285 = vperm.xlu0 %284, %v30
    %v286 = vpop.permute.xlu0 %285
    %vm287 = vcmp.eq.s32.totalorder %v32, %v286
    %v288 = vsel %vm287, 1, 0
    %v289 = vcvt.s32.f32 %v288
    %v291 = vsel %vm39, %v289, 0
    %293 = vmatprep.subr.mxu0 0.0
    %294 = vmatpush1.msra.mxu0 0.0
    %295 = vmatprep.subr.mxu0 0.0
    %296 = vmatpush1.msra.mxu0 0.0
    %297 = vmatprep.subr.mxu0 0.0
    %298 = vmatpush1.msra.mxu0 0.0
    %299 = vmatprep.subr.mxu0 0.0
    %300 = vmatpush1.msra.mxu0 0.0
    %301 = vmatprep.subr.mxu0 0.0
    %302 = vmatpush1.msra.mxu0 0.0
    %303 = vmatprep.subr.mxu0 0.0
    %304 = vmatpush1.msra.mxu0 0.0
    %305 = vmatprep.subr.mxu0 0.0
    %306 = vmatpush1.msra.mxu0 0.0
    %307 = vmatprep.subr.mxu0 0.0
    %308 = vmatpush1.msra.mxu0 0.0
    %309 = vmatprep.subr.mxu0 0.0
    %310 = vmatpush1.msra.mxu0 0.0
    %311 = vmatprep.subr.mxu0 0.0
    %312 = vmatpush1.msra.mxu0 0.0
    %313 = vmatprep.subr.mxu0 0.0
    %314 = vmatpush1.msra.mxu0 0.0
    %315 = vmatprep.subr.mxu0 0.0
    %316 = vmatpush1.msra.mxu0 0.0
    %317 = vmatprep.subr.mxu0 0.0
    %318 = vmatpush1.msra.mxu0 %v29
    %319 = vmatprep.subr.mxu0 0.0
    %320 = vmatpush1.msra.mxu0 %v28
    %321 = vmatprep.subr.mxu0 0.0
    %322 = vmatpush1.msra.mxu0 %v27
    %323 = vmatprep.subr.mxu0 0.0
    %324 = vmatpush1.msra.mxu0 %v26
    %325 = vmatprep.subr.mxu0 0.0
    %326 = vmatpush2.msra.mxu0 0.0
    %327 = vmatprep.subr.mxu0 0.0
    %328 = vmatpush2.msra.mxu0 0.0
    %329 = vmatprep.subr.mxu0 0.0
    %330 = vmatpush2.msra.mxu0 0.0
    %331 = vmatprep.subr.mxu0 0.0
    %332 = vmatpush2.msra.mxu0 0.0
    %333 = vmatprep.subr.mxu0 0.0
    %334 = vmatpush2.msra.mxu0 0.0
    %335 = vmatprep.subr.mxu0 0.0
    %336 = vmatpush2.msra.mxu0 0.0
    %337 = vmatprep.subr.mxu0 0.0
    %338 = vmatpush2.msra.mxu0 0.0
    %339 = vmatprep.subr.mxu0 0.0
    %340 = vmatpush2.msra.mxu0 0.0
    %341 = vmatprep.subr.mxu0 0.0
    %342 = vmatpush2.msra.mxu0 0.0
    %343 = vmatprep.subr.mxu0 0.0
    %344 = vmatpush2.msra.mxu0 0.0
    %345 = vmatprep.subr.mxu0 0.0
    %346 = vmatpush2.msra.mxu0 0.0
    %347 = vmatprep.subr.mxu0 0.0
    %348 = vmatpush2.msra.mxu0 0.0
    %349 = vmatprep.subr.mxu0 0.0
    %350 = vmatpush2.msra.mxu0 0.0
    %351 = vmatprep.subr.mxu0 0.0
    %352 = vmatpush2.msra.mxu0 0.0
    %353 = vmatprep.subr.mxu0 0.0
    %354 = vmatpush2.msra.mxu0 0.0
    %355 = vmatprep.subr.mxu0 0.0
    %356 = vmatpush2.msra.mxu0 0.0
    %357 = vmatprep.mubr.f32.mxu0 0.0
    %358 = vmatmul.mubr.f32.gmra.mxu0 %v291
    %v359 = vpop.f32.mrf.mxu0
    %v360 = vadd.f32 0.0, %v359
    %v361 = vpop.f32.mrf.mxu0
    %362 = vdwg.mxu0
    %364 = vrot.lane.b32.xlu0 %v360, 96
    %v365 = vpop.permute.xlu0 %364
    %vm367 = vcmask 1048320
    %368 = vst.msk [vmem:[#allocation5] sm:$0xff] %vm367, %v365
    // Predicated region
    $region14: #{tpu_custom_call.1} parent=1 // pred_check
      _
    $region15: #{tpu_custom_call.1} parent=1 // pred_check_branch
      %370 = sbr.rel (0) target = $region17
    $region16: #{tpu_custom_call.1} parent=1 // pred_region
      %s372 = ssub.s32 128, 128
      %373 = vsyncadd [#allocation4], %s372
      %s375 = sshll.u32 [#allocation5], 4
      %s376 = int_to_ptr.vmem [resolvable:$true] %s375
      %378 = dma.vmem_to_hbm [thread:$0]  %s376, 128, %s2, [#allocation4]
    $region17: #{tpu_custom_call.1} parent=1 // pred_fallthru
      _
    // Predicated region
    $region18: #{tpu_custom_call.1} parent=1 // pred_check
      _
    $region19: #{tpu_custom_call.1} parent=1 // pred_check_branch
      %380 = sbr.rel (0) target = $region21
    $region20: #{tpu_custom_call.1} parent=1 // pred_region
      %381 = dma.done [#allocation4], 128
    $region21: #{tpu_custom_call.1} parent=1 // pred_fallthru
      _
    %382 = vsyncpa [#allocation3], 1
    %383 = vsyncpa [#allocation4], 1

</llo_original>
